<compile_context>
chip_gen: v7x
topology: tpu7x:2x2x1
jax: 0.10.0
libtpu: 0.0.40
codegen_flags: <defaults>
</compile_context>

<pallas_src>
import functools
import math

import jax
import jax.numpy as jnp
from jax import lax
from jax.experimental import pallas as pl
from jax.experimental.pallas import tpu as pltpu


def _round_up(x, m):
    return ((x + m - 1) // m) * m


# ---------------------- fused TiedAutoEncoder kernel ------------------------
def _tied_ae_kernel(*refs, n_layers, use_bias, compute_recon):
    """Encoder (n linears, optional bias, tanh between) [+ tied decoder], fused."""
    x_ref = refs[0]
    pos = 1
    w_refs = refs[pos:pos + n_layers]
    pos += n_layers
    b_refs = None
    if use_bias:
        b_refs = refs[pos:pos + n_layers]
        pos += n_layers
    rb_refs = ()
    if compute_recon:
        rb_refs = refs[pos:pos + n_layers]
        pos += n_layers
    enc_ref = refs[pos]
    rec_ref = refs[pos + 1] if compute_recon else None

    # Encoder: F.linear(h, W_i[, b_i]) = h @ W_i^T (+ b_i); tanh between layers.
    h = x_ref[...].astype(jnp.float32)
    for i in range(n_layers):
        h = lax.dot_general(h, w_refs[i][...],
                            (((1,), (1,)), ((), ())),   # contract on W's last dim (no .T copy)
                            preferred_element_type=jnp.float32)
        if use_bias:
            h = h + b_refs[i][...]
        if i < n_layers - 1:
            h = jnp.tanh(h)
    enc_ref[...] = h.astype(enc_ref.dtype)

    if not compute_recon:
        return

    # Tied decoder: F.linear(h, W_rev^T, rb) = h @ W_rev + rb; tanh between layers.
    # (recon biases are always applied, even with use_bias=False — matches PyTorch.)
    r = h
    for i in range(n_layers):
        w = w_refs[n_layers - 1 - i]
        r = lax.dot_general(r, w[...],
                            (((1,), (0,)), ((), ())),   # plain h @ W
                            preferred_element_type=jnp.float32)
        r = r + rb_refs[i][...]
        if i < n_layers - 1:
            r = jnp.tanh(r)
    rec_ref[...] = r.astype(rec_ref.dtype)


def tied_autoencoder_forward(x, weights, recon_biases=None, biases=None, *,
                             compute_recon=True, block_b=256):
    """Fused TiedAutoEncoder forward from ONE pallas_call.

    weights[i]      : (shape_list[i+1], shape_list[i])   (PyTorch F.linear layout)
    biases[i]       : (shape_list[i+1],) or None         (use_bias=False)
    recon_biases[i] : already reversed, shape (shape_list[n-1-i],)

    Returns (encoded, reconstructed) when compute_recon else just encoded.
    """
    n = len(weights)
    B, K = x.shape
    d_in = weights[0].shape[1]
    d_enc = weights[-1].shape[0]
    assert K == d_in and block_b % 8 == 0
    use_bias = biases is not None
    if compute_recon:
        assert recon_biases is not None and len(recon_biases) == n

    tm = min(block_b, _round_up(B, 8))
    Bp = _round_up(B, tm)
    xp = x if Bp == B else jnp.pad(x, ((0, Bp - B), (0, 0)))

    inputs = [xp] + list(weights)
    in_specs = [pl.BlockSpec((tm, d_in), lambda i: (i, 0))]
    in_specs += [pl.BlockSpec(w.shape, lambda i: (0, 0)) for w in weights]
    if use_bias:
        b2d = [b.reshape(1, -1) for b in biases]
        inputs += b2d
        in_specs += [pl.BlockSpec(b.shape, lambda i: (0, 0)) for b in b2d]
    if compute_recon:
        rb2d = [b.reshape(1, -1) for b in recon_biases]
        inputs += rb2d
        in_specs += [pl.BlockSpec(b.shape, lambda i: (0, 0)) for b in rb2d]

    if compute_recon:
        out_shape = (jax.ShapeDtypeStruct((Bp, d_enc), x.dtype),
                     jax.ShapeDtypeStruct((Bp, d_in), x.dtype))
        out_specs = (pl.BlockSpec((tm, d_enc), lambda i: (i, 0)),
                     pl.BlockSpec((tm, d_in), lambda i: (i, 0)))
    else:
        out_shape = jax.ShapeDtypeStruct((Bp, d_enc), x.dtype)
        out_specs = pl.BlockSpec((tm, d_enc), lambda i: (i, 0))

    out = pl.pallas_call(
        functools.partial(_tied_ae_kernel, n_layers=n, use_bias=use_bias,
                          compute_recon=compute_recon),
        out_shape=out_shape,
        grid=(Bp // tm,),
        in_specs=in_specs,
        out_specs=out_specs,
        compiler_params=pltpu.CompilerParams(
            dimension_semantics=("parallel",)),
    )(*inputs)

    if compute_recon:
        enc, rec = out
        if Bp != B:
            enc, rec = enc[:B], rec[:B]
        return enc, rec
    enc = out
    return enc[:B] if Bp != B else enc


# -------- fused recon-loss kernel: tanh -> linear(+b) -> masked row MSE -----
def _recon_mse_kernel(final_ref, target_ref, mask_ref, w_ref, b_ref, o_ref):
    h = jnp.tanh(final_ref[...].astype(jnp.float32))
    recon = lax.dot_general(h, w_ref[...], (((1,), (1,)), ((), ())),
                            preferred_element_type=jnp.float32)
    recon = recon + b_ref[...]
    diff = target_ref[...].astype(jnp.float32) - recon
    per_row = jnp.mean(diff * diff, axis=-1, keepdims=True)   # XLU row reduce
    o_ref[...] = (per_row * mask_ref[...]).astype(o_ref.dtype)


def recon_mse_rows(final, target, mask, w, b, *, block_b=256):
    """Per-row masked MSE( target, tanh(final) @ W^T + b ), shape (B, 1) f32.

    The (B, span) reconstruction never leaves VMEM.
    """
    B, D = final.shape
    span, D2 = w.shape
    assert D == D2 and target.shape == (B, span) and block_b % 8 == 0
    tm = min(block_b, _round_up(B, 8))
    Bp = _round_up(B, tm)
    if Bp != B:
        pad = Bp - B
        final = jnp.pad(final, ((0, pad), (0, 0)))
        target = jnp.pad(target, ((0, pad), (0, 0)))
        mask = jnp.pad(mask, ((0, pad),))
    out = pl.pallas_call(
        _recon_mse_kernel,
        out_shape=jax.ShapeDtypeStruct((Bp, 1), jnp.float32),
        grid=(Bp // tm,),
        in_specs=[pl.BlockSpec((tm, D), lambda i: (i, 0)),
                  pl.BlockSpec((tm, span), lambda i: (i, 0)),
                  pl.BlockSpec((tm, 1), lambda i: (i, 0)),
                  pl.BlockSpec((span, D), lambda i: (0, 0)),
                  pl.BlockSpec((1, span), lambda i: (0, 0))],
        out_specs=pl.BlockSpec((tm, 1), lambda i: (i, 0)),
        compiler_params=pltpu.CompilerParams(
            dimension_semantics=("parallel",)),
    )(final, target, mask.reshape(Bp, 1), w, b.reshape(1, span))
    return out[:B] if Bp != B else out


# --------------------------- pure-JAX references ----------------------------
def tied_autoencoder_reference(x, weights, recon_biases, biases=None):
    n = len(weights)
    enc = x
    for i in range(n):
        enc = enc @ weights[i].T
        if biases is not None:
            enc = enc + biases[i]
        if i < n - 1:
            enc = jnp.tanh(enc)
    rec = enc
    rev = weights[::-1]
    for i in range(n):
        rec = rec @ rev[i] + recon_biases[i]
        if i < n - 1:
            rec = jnp.tanh(rec)
    return enc, rec


# ----------------------- MultipleEmbedding forward (glue) -------------------
def multiple_embedding_forward(x, params, random_chrom, *, use_pallas=True,
                               block_b=256):
    """Mirrors MultipleEmbedding.forward: returns (final, recon_loss)."""
    num_list = params["num_list"]          # python ints: [0, c0, c0+c1, ...]
    dim = params["dim"]
    B = x.shape[0]
    final = jnp.zeros((B, dim), jnp.float32)

    # Per-chromosome: select its node ids, embed, encode, scatter into `final`.
    # TODO(synk): dynamic-shaped boolean selection (`x[select]`, `final[select]=`) has no
    #             static-shape Pallas equivalent; implemented with clip/take + jnp.where.
    for i in range(len(num_list) - 1):
        lo, hi = num_list[i], num_list[i + 1]
        select = (x >= lo + 1) & (x < hi + 1)
        emb = params["embeddings"][i]
        local = jnp.clip(x - (lo + 1), 0, emb.shape[0] - 1)
        adj = jnp.take(emb, local, axis=0)          # SparseEmbedding lookup (dense)
        # TODO(synk): nn.Dropout(0.2) on `adj` is treated as eval-mode identity (no RNG drop).
        weights, recon_biases = params["ae_params"][i]
        if use_pallas:
            # Decoder output of the tied AE is unused by MultipleEmbedding.forward:
            # encoder-only kernel (half the matmuls, no recon writeback).
            enc = tied_autoencoder_forward(adj, weights, compute_recon=False,
                                           block_b=block_b)
        else:
            enc, _rec = tied_autoencoder_reference(adj, weights, recon_biases)
        # Static-shape equivalent of `final[select] = enc` (also covers empty groups).
        final = jnp.where(select[:, None], enc, final)

    # Inter-chromosomal reconstruction loss against the chosen chromosome.
    rc = random_chrom
    lo, hi = num_list[rc], num_list[rc + 1]
    other = ((x < lo + 1) | (x >= hi + 1)) & (x != 0)
    inter = params["inter_initial"]
    rows = jnp.clip(x - 1, 0, inter.shape[0] - 1)
    target = jnp.take(inter, rows, axis=0)[:, lo:hi]
    w_r, b_r = params["recon_params"][rc]
    mask = other.astype(jnp.float32)
    if use_pallas:
        per_row_masked = recon_mse_rows(final, target, mask, w_r, b_r,
                                        block_b=block_b)[:, 0]
    else:
        recon = jnp.tanh(final) @ w_r.T + b_r
        per_row_masked = jnp.mean((target - recon) ** 2, axis=-1) * mask
    cnt = jnp.sum(other)
    loss = jnp.where(cnt > 0,
                     jnp.sum(per_row_masked) /
                     jnp.maximum(cnt, 1).astype(jnp.float32),
                     0.0) * 100.0
    return final, jnp.reshape(loss, (1,))


# ------------------------------ parameter init ------------------------------
def init_multiple_embedding(key, *, chrom_sizes, input_sizes, dim,
                            dtype=jnp.float32):
    n_chrom = len(chrom_sizes)
    num_list = [0]
    for s in chrom_sizes:
        num_list.append(num_list[-1] + s)
    chrom_range = [(num_list[i], num_list[i + 1]) for i in range(n_chrom)]
    n_total = num_list[-1]

    kit = iter(jax.random.split(key, 8 * n_chrom * 4 + 8))

    embeddings = [jax.random.normal(next(kit), (chrom_sizes[i], input_sizes[i]), dtype)
                  for i in range(n_chrom)]
    # TODO(synk): the scipy z-score preprocessing of inter_initial is construction-time data prep; skipped.
    inter_initial = jax.random.normal(next(kit), (n_total, n_total), dtype)

    ae_params = []
    for i in range(n_chrom):
        shape_list = [input_sizes[i], dim, dim]
        weights, recon_biases = [], []
        for j in range(len(shape_list) - 1):
            w_bound = 1.0 / math.sqrt(shape_list[j])        # kaiming_uniform(a=sqrt(5))
            weights.append(jax.random.uniform(
                next(kit), (shape_list[j + 1], shape_list[j]), dtype,
                minval=-w_bound, maxval=w_bound))
            r_bound = 1.0 / math.sqrt(shape_list[j + 1])
            recon_biases.append(jax.random.uniform(
                next(kit), (shape_list[j],), dtype, minval=-r_bound, maxval=r_bound))
        recon_biases = recon_biases[::-1]
        ae_params.append((weights, recon_biases))

    recon_params = []
    for lo, hi in chrom_range:
        span = hi - lo
        bnd = 1.0 / math.sqrt(dim)
        recon_params.append((
            jax.random.uniform(next(kit), (span, dim), dtype, minval=-bnd, maxval=bnd),
            jax.random.uniform(next(kit), (span,), dtype, minval=-bnd, maxval=bnd)))

    return dict(num_list=num_list, chrom_range=chrom_range,
                embeddings=embeddings, inter_initial=inter_initial,
                ae_params=ae_params, recon_params=recon_params, dim=dim)


if __name__ == "__main__":
    dim = 128                      # embedding dim (lane-dense)
    chrom_sizes = [128, 128]       # bins per chromosome
    input_sizes = [256, 256]       # per-chromosome embedding row width
    batch = 64                     # number of node ids per forward

    key = jax.random.PRNGKey(0)
    key, kx, krc, kp = jax.random.split(key, 4)
    params = init_multiple_embedding(kp, chrom_sizes=chrom_sizes,
                                     input_sizes=input_sizes, dim=dim)
    n_total = params["num_list"][-1]
    # node ids are 1-based; 0 means padding (excluded from every group and the loss)
    x = jax.random.randint(kx, (batch,), 0, n_total + 1, dtype=jnp.int32)
    # host-side deterministic stand-in for np.random.choice of the chromosome
    random_chrom = int(jax.random.randint(krc, (), 0, len(chrom_sizes)))

    # Full MultipleEmbedding forward (encoder-only AE kernel + fused loss kernel).
    final, recon_loss = multiple_embedding_forward(
        x, params, random_chrom, use_pallas=True, block_b=64)
    jax.block_until_ready((final, recon_loss))

    final_ref, loss_ref = multiple_embedding_forward(
        x, params, random_chrom, use_pallas=False)

    assert final.shape == (batch, dim)
    assert recon_loss.shape == (1,)
    assert jnp.allclose(final, final_ref, atol=1e-4, rtol=1e-4)
    assert jnp.allclose(recon_loss, loss_ref, atol=1e-3, rtol=1e-3)

    # Standalone check of the full tied autoencoder kernel (encoder + tied decoder).
    weights0, rbias0 = params["ae_params"][0]
    adj0 = jax.random.normal(jax.random.PRNGKey(1), (batch, input_sizes[0]),
                             jnp.float32)
    enc_k, rec_k = tied_autoencoder_forward(adj0, weights0, rbias0, block_b=64)
    jax.block_until_ready((enc_k, rec_k))
    enc_r, rec_r = tied_autoencoder_reference(adj0, weights0, rbias0)
    assert jnp.allclose(enc_k, enc_r, atol=1e-4, rtol=1e-4)
    assert jnp.allclose(rec_k, rec_r, atol=1e-4, rtol=1e-4)

    print("KERNEL_OK")
</pallas_src>

<mosaic_0001>
module attributes {stable_mosaic.version = 11 : i64} {
  func.func @_tied_ae_kernel(%arg0: i32, %arg1: memref<64x256xf32, #tpu.memory_space<vmem>>, %arg2: memref<128x256xf32, #tpu.memory_space<vmem>>, %arg3: memref<128x128xf32, #tpu.memory_space<vmem>>, %arg4: memref<64x128xf32, #tpu.memory_space<vmem>>) attributes {dimension_semantics = [#tpu.dimension_semantics<parallel>], iteration_bounds = array<i64: 1>, scalar_prefetch = 0 : i64, scratch_operands = 0 : i64, tpu.core_type = #tpu.core_type<tc>, window_params = [{transform_indices = @transform_0, window_bounds = array<i64: 64, 256>}, {pipeline_mode = #tpu.pipeline_mode<synchronous>, transform_indices = @transform_1, window_bounds = array<i64: 128, 256>}, {pipeline_mode = #tpu.pipeline_mode<synchronous>, transform_indices = @transform_2, window_bounds = array<i64: 128, 128>}, {transform_indices = @transform_3, window_bounds = array<i64: 64, 128>}]} {
    %c0 = arith.constant 0 : index
    %c0_0 = arith.constant 0 : index
    %0 = vector.load %arg1[%c0, %c0_0] : memref<64x256xf32, #tpu.memory_space<vmem>>, vector<64x256xf32>
    %c0_1 = arith.constant 0 : index
    %c0_2 = arith.constant 0 : index
    %1 = vector.load %arg2[%c0_1, %c0_2] : memref<128x256xf32, #tpu.memory_space<vmem>>, vector<128x256xf32>
    %cst = arith.constant dense<0.000000e+00> : vector<64x128xf32>
    %2 = tpu.matmul %0, %1, %cst {dimension_numbers = #tpu.dot_dimension_numbers<[1], [1], [0], [0], [0, 0, 1, 0], [], []>} : vector<64x256xf32>, vector<128x256xf32>, vector<64x128xf32> -> vector<64x128xf32>
    %3 = math.tanh %2 : vector<64x128xf32>
    %c0_3 = arith.constant 0 : index
    %c0_4 = arith.constant 0 : index
    %4 = vector.load %arg3[%c0_3, %c0_4] : memref<128x128xf32, #tpu.memory_space<vmem>>, vector<128x128xf32>
    %cst_5 = arith.constant dense<0.000000e+00> : vector<64x128xf32>
    %5 = tpu.matmul %3, %4, %cst_5 {dimension_numbers = #tpu.dot_dimension_numbers<[1], [1], [0], [0], [0, 0, 1, 0], [], []>} : vector<64x128xf32>, vector<128x128xf32>, vector<64x128xf32> -> vector<64x128xf32>
    %c0_6 = arith.constant 0 : index
    %c0_7 = arith.constant 0 : index
    %6 = vector.load %arg4[%c0_6, %c0_7] : memref<64x128xf32, #tpu.memory_space<vmem>>, vector<64x128xf32>
    tpu.vector_store %arg4[%c0_6, %c0_7], %5 {strides = array<i32>} : memref<64x128xf32, #tpu.memory_space<vmem>>, vector<64x128xf32>,
    return
  }
  func.func @transform_0(%arg0: i32) -> (i32, i32) {
    %c0_i32 = arith.constant 0 : i32
    %c0_i32_0 = arith.constant 0 : i32
    return %arg0, %c0_i32 : i32, i32
  }
  func.func @transform_1(%arg0: i32) -> (i32, i32) {
    %c0_i32 = arith.constant 0 : i32
    %c0_i32_0 = arith.constant 0 : i32
    %c0_i32_1 = arith.constant 0 : i32
    return %c0_i32, %c0_i32_0 : i32, i32
  }
  func.func @transform_2(%arg0: i32) -> (i32, i32) {
    %c0_i32 = arith.constant 0 : i32
    %c0_i32_0 = arith.constant 0 : i32
    %c0_i32_1 = arith.constant 0 : i32
    return %c0_i32, %c0_i32_0 : i32, i32
  }
  func.func @transform_3(%arg0: i32) -> (i32, i32) {
    %c0_i32 = arith.constant 0 : i32
    %c0_i32_0 = arith.constant 0 : i32
    return %arg0, %c0_i32 : i32, i32
  }
}

</mosaic_0001>

<llo_original>
// kernel: tpu_custom_call.1
$region0: #{tpu_custom_call.1}
  #allocation0 [shape = 'u32[]', space=smem, size = 0x4, offset = 0x4, fixed_abs, tag = 'smem constant byte address 0x4 - core index']
  #allocation1 [shape = 'u32[144,128]{1,0:T(1,128)}', space=vmem, size = 0x12000, scoped, tag = 'internal scratch']
  %s0 = inlined_call_operand.hbm [shape: f32[64,256], index: 0, kind: input, shape index: {}]
  %s1 = inlined_call_operand.hbm [shape: f32[128,256], index: 1, kind: input, shape index: {}]
  %s2 = inlined_call_operand.hbm [shape: f32[128,128], index: 2, kind: input, shape index: {}]
  %s3 = inlined_call_operand.hbm [shape: f32[64,128], index: 3, kind: output, shape index: {}]
  %s4 = sld [smem:[#allocation0]]
  $region34: #{tpu_custom_call.1} parent=0
    _
  %s6 = ssub.s32 1, %s4
  %s7 = scalar_select 0, %s6, %s4
  $region1: #{tpu_custom_call.1} parent=0
    #allocation2 [shape = 'u8[65536]{0}', space=vmem, size = 0x10000, scoped, tag = 'input window, operand 0, single buffered']
    #allocation3 [shape = 's32[1]{0}', space=sflag, size = 0x4, scoped, tag = 'scoped memory for tpu_custom_call.1']
    #allocation4 [shape = 's32[1]{0}', space=sflag, size = 0x4, scoped, tag = 'scoped memory for tpu_custom_call.1']
    #allocation5 [shape = 'u8[131072]{0}', space=vmem, size = 0x20000, scoped, tag = 'input window, operand 1, single buffered']
    #allocation6 [shape = 's32[1]{0}', space=sflag, size = 0x4, scoped, tag = 'scoped memory for tpu_custom_call.1']
    #allocation7 [shape = 'u8[65536]{0}', space=vmem, size = 0x10000, scoped, tag = 'input window, operand 2, single buffered']
    #allocation8 [shape = 'u8[32768]{0}', space=vmem, size = 0x8000, scoped, tag = 'output window, operand 0, single buffered']
    %8 = vsyncpa [#allocation3], 0
    %9 = vsyncpa [#allocation6], 0
    %10 = vsyncpa [#allocation4], 0
    // Predicated region
    $region2: #{tpu_custom_call.1} parent=1 // pred_check
      _
    $region3: #{tpu_custom_call.1} parent=1 // pred_check_branch
      %12 = sbr.rel (0) target = $region5
    $region4: #{tpu_custom_call.1} parent=1 // pred_region
      %s14 = ssub.s32 2048, 2048
      %15 = vsyncadd [#allocation3], %s14
      %s16 = sshll.u32 [#allocation2], 4
      %s17 = int_to_ptr.vmem [resolvable:$true] %s16
      %22 = dma.hbm_to_vmem [thread:$0]  %s0, 2048, %s17, [#allocation3], 256, 256, 16
    $region5: #{tpu_custom_call.1} parent=1 // pred_fallthru
      _
    // Predicated region
    $region6: #{tpu_custom_call.1} parent=1 // pred_check
      _
    $region7: #{tpu_custom_call.1} parent=1 // pred_check_branch
      %24 = sbr.rel (0) target = $region9
    $region8: #{tpu_custom_call.1} parent=1 // pred_region
      %s26 = ssub.s32 4096, 4096
      %27 = vsyncadd [#allocation6], %s26
      %s28 = sshll.u32 [#allocation5], 4
      %s29 = int_to_ptr.vmem [resolvable:$true] %s28
      %34 = dma.hbm_to_vmem [thread:$0]  %s1, 4096, %s29, [#allocation6], 256, 256, 16
    $region9: #{tpu_custom_call.1} parent=1 // pred_fallthru
      _
    // Predicated region
    $region10: #{tpu_custom_call.1} parent=1 // pred_check
      _
    $region11: #{tpu_custom_call.1} parent=1 // pred_check_branch
      %36 = sbr.rel (0) target = $region13
    $region12: #{tpu_custom_call.1} parent=1 // pred_region
      %s38 = ssub.s32 2048, 2048
      %39 = vsyncadd [#allocation6], %s38
      %s40 = sshll.u32 [#allocation7], 4
      %s41 = int_to_ptr.vmem [resolvable:$true] %s40
      %46 = dma.hbm_to_vmem [thread:$0]  %s2, 2048, %s41, [#allocation6], 128, 128, 8
    $region13: #{tpu_custom_call.1} parent=1 // pred_fallthru
      _
    // Predicated region
    $region14: #{tpu_custom_call.1} parent=1 // pred_check
      _
    $region15: #{tpu_custom_call.1} parent=1 // pred_check_branch
      %48 = sbr.rel (0) target = $region17
    $region16: #{tpu_custom_call.1} parent=1 // pred_region
      %49 = dma.done [#allocation3], 2048
    $region17: #{tpu_custom_call.1} parent=1 // pred_fallthru
      _
    // Predicated region
    $region18: #{tpu_custom_call.1} parent=1 // pred_check
      _
    $region19: #{tpu_custom_call.1} parent=1 // pred_check_branch
      %51 = sbr.rel (0) target = $region21
    $region20: #{tpu_custom_call.1} parent=1 // pred_region
      %52 = dma.done [#allocation6], 4096
    $region21: #{tpu_custom_call.1} parent=1 // pred_fallthru
      _
    // Predicated region
    $region22: #{tpu_custom_call.1} parent=1 // pred_check
      _
    $region23: #{tpu_custom_call.1} parent=1 // pred_check_branch
      %54 = sbr.rel (0) target = $region25
    $region24: #{tpu_custom_call.1} parent=1 // pred_region
      %55 = dma.done [#allocation6], 2048
    $region25: #{tpu_custom_call.1} parent=1 // pred_fallthru
      _
    %v56 = vld [vmem:[#allocation2] sm:$0xff]
    %v57 = vld [vmem:[#allocation2 + $0x8] sm:$0xff]
    %v58 = vld [vmem:[#allocation2 + $0x10] sm:$0xff]
    %v59 = vld [vmem:[#allocation2 + $0x18] sm:$0xff]
    %v60 = vld [vmem:[#allocation2 + $0x20] sm:$0xff]
    %v61 = vld [vmem:[#allocation2 + $0x28] sm:$0xff]
    %v62 = vld [vmem:[#allocation2 + $0x30] sm:$0xff]
    %v63 = vld [vmem:[#allocation2 + $0x38] sm:$0xff]
    %v64 = vld [vmem:[#allocation2 + $0x40] sm:$0xff]
    %v65 = vld [vmem:[#allocation2 + $0x48] sm:$0xff]
    %v66 = vld [vmem:[#allocation2 + $0x50] sm:$0xff]
    %v67 = vld [vmem:[#allocation2 + $0x58] sm:$0xff]
    %v68 = vld [vmem:[#allocation2 + $0x60] sm:$0xff]
    %v69 = vld [vmem:[#allocation2 + $0x68] sm:$0xff]
    %v70 = vld [vmem:[#allocation2 + $0x70] sm:$0xff]
    %v71 = vld [vmem:[#allocation2 + $0x78] sm:$0xff]
    %v72 = vld [vmem:[#allocation5] sm:$0xff]
    %v73 = vld [vmem:[#allocation5 + $0x8] sm:$0xff]
    %v74 = vld [vmem:[#allocation5 + $0x10] sm:$0xff]
    %v75 = vld [vmem:[#allocation5 + $0x18] sm:$0xff]
    %v76 = vld [vmem:[#allocation5 + $0x20] sm:$0xff]
    %v77 = vld [vmem:[#allocation5 + $0x28] sm:$0xff]
    %v78 = vld [vmem:[#allocation5 + $0x30] sm:$0xff]
    %v79 = vld [vmem:[#allocation5 + $0x38] sm:$0xff]
    %v80 = vld [vmem:[#allocation5 + $0x40] sm:$0xff]
    %v81 = vld [vmem:[#allocation5 + $0x48] sm:$0xff]
    %v82 = vld [vmem:[#allocation5 + $0x50] sm:$0xff]
    %v83 = vld [vmem:[#allocation5 + $0x58] sm:$0xff]
    %v84 = vld [vmem:[#allocation5 + $0x60] sm:$0xff]
    %v85 = vld [vmem:[#allocation5 + $0x68] sm:$0xff]
    %v86 = vld [vmem:[#allocation5 + $0x70] sm:$0xff]
    %v87 = vld [vmem:[#allocation5 + $0x78] sm:$0xff]
    %v88 = vld [vmem:[#allocation5 + $0x80] sm:$0xff]
    %v89 = vld [vmem:[#allocation5 + $0x88] sm:$0xff]
    %v90 = vld [vmem:[#allocation5 + $0x90] sm:$0xff]
    %v91 = vld [vmem:[#allocation5 + $0x98] sm:$0xff]
    %v92 = vld [vmem:[#allocation5 + $0xa0] sm:$0xff]
    %v93 = vld [vmem:[#allocation5 + $0xa8] sm:$0xff]
    %v94 = vld [vmem:[#allocation5 + $0xb0] sm:$0xff]
    %v95 = vld [vmem:[#allocation5 + $0xb8] sm:$0xff]
    %v96 = vld [vmem:[#allocation5 + $0xc0] sm:$0xff]
    %v97 = vld [vmem:[#allocation5 + $0xc8] sm:$0xff]
    %v98 = vld [vmem:[#allocation5 + $0xd0] sm:$0xff]
    %v99 = vld [vmem:[#allocation5 + $0xd8] sm:$0xff]
    %v100 = vld [vmem:[#allocation5 + $0xe0] sm:$0xff]
    %v101 = vld [vmem:[#allocation5 + $0xe8] sm:$0xff]
    %v102 = vld [vmem:[#allocation5 + $0xf0] sm:$0xff]
    %v103 = vld [vmem:[#allocation5 + $0xf8] sm:$0xff]
    %104 = vmatprep.subr.mxu0 %v73
    %105 = vmatpush1.xpose.msra.mxu0 %v72
    %106 = vmatprep.subr.mxu0 %v75
    %107 = vmatpush1.xpose.msra.mxu0 %v74
    %108 = vmatprep.subr.mxu0 %v77
    %109 = vmatpush1.xpose.msra.mxu0 %v76
    %110 = vmatprep.subr.mxu0 %v79
    %111 = vmatpush1.xpose.msra.mxu0 %v78
    %112 = vmatprep.subr.mxu0 %v81
    %113 = vmatpush1.xpose.msra.mxu0 %v80
    %114 = vmatprep.subr.mxu0 %v83
    %115 = vmatpush1.xpose.msra.mxu0 %v82
    %116 = vmatprep.subr.mxu0 %v85
    %117 = vmatpush1.xpose.msra.mxu0 %v84
    %118 = vmatprep.subr.mxu0 %v87
    %119 = vmatpush1.xpose.msra.mxu0 %v86
    %120 = vmatprep.subr.mxu0 %v89
    %121 = vmatpush1.xpose.msra.mxu0 %v88
    %122 = vmatprep.subr.mxu0 %v91
    %123 = vmatpush1.xpose.msra.mxu0 %v90
    %124 = vmatprep.subr.mxu0 %v93
    %125 = vmatpush1.xpose.msra.mxu0 %v92
    %126 = vmatprep.subr.mxu0 %v95
    %127 = vmatpush1.xpose.msra.mxu0 %v94
    %128 = vmatprep.subr.mxu0 %v97
    %129 = vmatpush1.xpose.msra.mxu0 %v96
    %130 = vmatprep.subr.mxu0 %v99
    %131 = vmatpush1.xpose.msra.mxu0 %v98
    %132 = vmatprep.subr.mxu0 %v101
    %133 = vmatpush1.xpose.msra.mxu0 %v100
    %134 = vmatprep.subr.mxu0 %v103
    %135 = vmatpush1.xpose.msra.mxu0 %v102
    %136 = vmatprep.subr.mxu0 0.0
    %137 = vmatpush1.xpose.msra.mxu0 0.0
    %138 = vmatprep.subr.mxu0 0.0
    %139 = vmatpush1.xpose.msra.mxu0 0.0
    %140 = vmatprep.subr.mxu0 0.0
    %141 = vmatpush1.xpose.msra.mxu0 0.0
    %142 = vmatprep.subr.mxu0 0.0
    %143 = vmatpush1.xpose.msra.mxu0 0.0
    %144 = vmatprep.subr.mxu0 0.0
    %145 = vmatpush1.xpose.msra.mxu0 0.0
    %146 = vmatprep.subr.mxu0 0.0
    %147 = vmatpush1.xpose.msra.mxu0 0.0
    %148 = vmatprep.subr.mxu0 0.0
    %149 = vmatpush1.xpose.msra.mxu0 0.0
    %150 = vmatprep.subr.mxu0 0.0
    %151 = vmatpush1.xpose.msra.mxu0 0.0
    %152 = vmatprep.subr.mxu0 0.0
    %153 = vmatpush1.xpose.msra.mxu0 0.0
    %154 = vmatprep.subr.mxu0 0.0
    %155 = vmatpush1.xpose.msra.mxu0 0.0
    %156 = vmatprep.subr.mxu0 0.0
    %157 = vmatpush1.xpose.msra.mxu0 0.0
    %158 = vmatprep.subr.mxu0 0.0
    %159 = vmatpush1.xpose.msra.mxu0 0.0
    %160 = vmatprep.subr.mxu0 0.0
    %161 = vmatpush1.xpose.msra.mxu0 0.0
    %162 = vmatprep.subr.mxu0 0.0
    %163 = vmatpush1.xpose.msra.mxu0 0.0
    %164 = vmatprep.subr.mxu0 0.0
    %165 = vmatpush1.xpose.msra.mxu0 0.0
    %166 = vmatprep.subr.mxu0 0.0
    %167 = vmatpush1.xpose.msra.mxu0 0.0
    %168 = vmatprep.mubr.f32.mxu0 %v57
    %169 = vmatmul.mubr.f32.gmra.mrb[0].mxu0 %v56
    %v170 = vpop.f32.mrb[0].mxu0
    %v171 = vadd.f32 0.0, %v170
    %v172 = vpop.f32.mrb[0].mxu0
    %173 = vmatprep.mubr.f32.mxu0 %v59
    %174 = vmatmul.mubr.f32.gmra.mrb[0].mxu0 %v58
    %v175 = vpop.f32.mrb[0].mxu0
    %v176 = vadd.f32 0.0, %v175
    %v177 = vpop.f32.mrb[0].mxu0
    %178 = vmatprep.mubr.f32.mxu0 %v61
    %179 = vmatmul.mubr.f32.gmra.mrb[0].mxu0 %v60
    %v180 = vpop.f32.mrb[0].mxu0
    %v181 = vadd.f32 0.0, %v180
    %v182 = vpop.f32.mrb[0].mxu0
    %183 = vmatprep.mubr.f32.mxu0 %v63
    %184 = vmatmul.mubr.f32.gmra.mrb[0].mxu0 %v62
    %v185 = vpop.f32.mrb[0].mxu0
    %v186 = vadd.f32 0.0, %v185
    %v187 = vpop.f32.mrb[0].mxu0
    %188 = vmatprep.mubr.f32.mxu0 %v65
    %189 = vmatmul.mubr.f32.gmra.mrb[0].mxu0 %v64
    %v190 = vpop.f32.mrb[0].mxu0
    %v191 = vadd.f32 0.0, %v190
    %v192 = vpop.f32.mrb[0].mxu0
    %193 = vmatprep.mubr.f32.mxu0 %v67
    %194 = vmatmul.mubr.f32.gmra.mrb[0].mxu0 %v66
    %v195 = vpop.f32.mrb[0].mxu0
    %v196 = vadd.f32 0.0, %v195
    %v197 = vpop.f32.mrb[0].mxu0
    %198 = vmatprep.mubr.f32.mxu0 %v69
    %199 = vmatmul.mubr.f32.gmra.mrb[0].mxu0 %v68
    %v200 = vpop.f32.mrb[0].mxu0
    %v201 = vadd.f32 0.0, %v200
    %v202 = vpop.f32.mrb[0].mxu0
    %203 = vmatprep.mubr.f32.mxu0 %v71
    %204 = vmatmul.mubr.f32.gmra.mrb[0].mxu0 %v70
    %v205 = vpop.f32.mrb[0].mxu0
    %v206 = vadd.f32 0.0, %v205
    %v207 = vpop.f32.mrb[0].mxu0
    %208 = vdwg.mxu0
    %v209 = vtanh.pop %v171
    %v210 = vtanh.pop %v176
    %v211 = vtanh.pop %v181
    %v212 = vtanh.pop %v186
    %v213 = vtanh.pop %v191
    %v214 = vtanh.pop %v196
    %v215 = vtanh.pop %v201
    %v216 = vtanh.pop %v206
    %v217 = vld [vmem:[#allocation7] sm:$0xff]
    %v218 = vld [vmem:[#allocation7 + $0x8] sm:$0xff]
    %v219 = vld [vmem:[#allocation7 + $0x10] sm:$0xff]
    %v220 = vld [vmem:[#allocation7 + $0x18] sm:$0xff]
    %v221 = vld [vmem:[#allocation7 + $0x20] sm:$0xff]
    %v222 = vld [vmem:[#allocation7 + $0x28] sm:$0xff]
    %v223 = vld [vmem:[#allocation7 + $0x30] sm:$0xff]
    %v224 = vld [vmem:[#allocation7 + $0x38] sm:$0xff]
    %v225 = vld [vmem:[#allocation7 + $0x40] sm:$0xff]
    %v226 = vld [vmem:[#allocation7 + $0x48] sm:$0xff]
    %v227 = vld [vmem:[#allocation7 + $0x50] sm:$0xff]
    %v228 = vld [vmem:[#allocation7 + $0x58] sm:$0xff]
    %v229 = vld [vmem:[#allocation7 + $0x60] sm:$0xff]
    %v230 = vld [vmem:[#allocation7 + $0x68] sm:$0xff]
    %v231 = vld [vmem:[#allocation7 + $0x70] sm:$0xff]
    %v232 = vld [vmem:[#allocation7 + $0x78] sm:$0xff]
    %233 = vmatprep.subr.mxu0 0.0
    %234 = vmatpush1.xpose.msra.mxu0 %v217
    %235 = vmatprep.subr.mxu0 0.0
    %236 = vmatpush1.xpose.msra.mxu0 %v218
    %237 = vmatprep.subr.mxu0 0.0
    %238 = vmatpush1.xpose.msra.mxu0 %v219
    %239 = vmatprep.subr.mxu0 0.0
    %240 = vmatpush1.xpose.msra.mxu0 %v220
    %241 = vmatprep.subr.mxu0 0.0
    %242 = vmatpush1.xpose.msra.mxu0 %v221
    %243 = vmatprep.subr.mxu0 0.0
    %244 = vmatpush1.xpose.msra.mxu0 %v222
    %245 = vmatprep.subr.mxu0 0.0
    %246 = vmatpush1.xpose.msra.mxu0 %v223
    %247 = vmatprep.subr.mxu0 0.0
    %248 = vmatpush1.xpose.msra.mxu0 %v224
    %249 = vmatprep.subr.mxu0 0.0
    %250 = vmatpush1.xpose.msra.mxu0 %v225
    %251 = vmatprep.subr.mxu0 0.0
    %252 = vmatpush1.xpose.msra.mxu0 %v226
    %253 = vmatprep.subr.mxu0 0.0
    %254 = vmatpush1.xpose.msra.mxu0 %v227
    %255 = vmatprep.subr.mxu0 0.0
    %256 = vmatpush1.xpose.msra.mxu0 %v228
    %257 = vmatprep.subr.mxu0 0.0
    %258 = vmatpush1.xpose.msra.mxu0 %v229
    %259 = vmatprep.subr.mxu0 0.0
    %260 = vmatpush1.xpose.msra.mxu0 %v230
    %261 = vmatprep.subr.mxu0 0.0
    %262 = vmatpush1.xpose.msra.mxu0 %v231
    %263 = vmatprep.subr.mxu0 0.0
    %264 = vmatpush1.xpose.msra.mxu0 %v232
    %265 = vmatprep.subr.mxu0 0.0
    %266 = vmatpush1.xpose.msra.mxu0 0.0
    %267 = vmatprep.subr.mxu0 0.0
    %268 = vmatpush1.xpose.msra.mxu0 0.0
    %269 = vmatprep.subr.mxu0 0.0
    %270 = vmatpush1.xpose.msra.mxu0 0.0
    %271 = vmatprep.subr.mxu0 0.0
    %272 = vmatpush1.xpose.msra.mxu0 0.0
    %273 = vmatprep.subr.mxu0 0.0
    %274 = vmatpush1.xpose.msra.mxu0 0.0
    %275 = vmatprep.subr.mxu0 0.0
    %276 = vmatpush1.xpose.msra.mxu0 0.0
    %277 = vmatprep.subr.mxu0 0.0
    %278 = vmatpush1.xpose.msra.mxu0 0.0
    %279 = vmatprep.subr.mxu0 0.0
    %280 = vmatpush1.xpose.msra.mxu0 0.0
    %281 = vmatprep.subr.mxu0 0.0
    %282 = vmatpush1.xpose.msra.mxu0 0.0
    %283 = vmatprep.subr.mxu0 0.0
    %284 = vmatpush1.xpose.msra.mxu0 0.0
    %285 = vmatprep.subr.mxu0 0.0
    %286 = vmatpush1.xpose.msra.mxu0 0.0
    %287 = vmatprep.subr.mxu0 0.0
    %288 = vmatpush1.xpose.msra.mxu0 0.0
    %289 = vmatprep.subr.mxu0 0.0
    %290 = vmatpush1.xpose.msra.mxu0 0.0
    %291 = vmatprep.subr.mxu0 0.0
    %292 = vmatpush1.xpose.msra.mxu0 0.0
    %293 = vmatprep.subr.mxu0 0.0
    %294 = vmatpush1.xpose.msra.mxu0 0.0
    %295 = vmatprep.subr.mxu0 0.0
    %296 = vmatpush1.xpose.msra.mxu0 0.0
    %297 = vmatprep.mubr.f32.mxu0 0.0
    %298 = vmatmul.mubr.f32.gmra.mrb[0].mxu0 %v209
    %v299 = vpop.f32.mrb[0].mxu0
    %v300 = vadd.f32 0.0, %v299
    %v301 = vpop.f32.mrb[0].mxu0
    %302 = vmatprep.mubr.f32.mxu0 0.0
    %303 = vmatmul.mubr.f32.gmra.mrb[0].mxu0 %v210
    %v304 = vpop.f32.mrb[0].mxu0
    %v305 = vadd.f32 0.0, %v304
    %v306 = vpop.f32.mrb[0].mxu0
    %307 = vmatprep.mubr.f32.mxu0 0.0
    %308 = vmatmul.mubr.f32.gmra.mrb[0].mxu0 %v211
    %v309 = vpop.f32.mrb[0].mxu0
    %v310 = vadd.f32 0.0, %v309
    %v311 = vpop.f32.mrb[0].mxu0
    %312 = vmatprep.mubr.f32.mxu0 0.0
    %313 = vmatmul.mubr.f32.gmra.mrb[0].mxu0 %v212
    %v314 = vpop.f32.mrb[0].mxu0
    %v315 = vadd.f32 0.0, %v314
    %v316 = vpop.f32.mrb[0].mxu0
    %317 = vmatprep.mubr.f32.mxu0 0.0
    %318 = vmatmul.mubr.f32.gmra.mrb[0].mxu0 %v213
    %v319 = vpop.f32.mrb[0].mxu0
    %v320 = vadd.f32 0.0, %v319
    %v321 = vpop.f32.mrb[0].mxu0
    %322 = vmatprep.mubr.f32.mxu0 0.0
    %323 = vmatmul.mubr.f32.gmra.mrb[0].mxu0 %v214
    %v324 = vpop.f32.mrb[0].mxu0
    %v325 = vadd.f32 0.0, %v324
    %v326 = vpop.f32.mrb[0].mxu0
    %327 = vmatprep.mubr.f32.mxu0 0.0
    %328 = vmatmul.mubr.f32.gmra.mrb[0].mxu0 %v215
    %v329 = vpop.f32.mrb[0].mxu0
    %v330 = vadd.f32 0.0, %v329
    %v331 = vpop.f32.mrb[0].mxu0
    %332 = vmatprep.mubr.f32.mxu0 0.0
    %333 = vmatmul.mubr.f32.gmra.mrb[0].mxu0 %v216
    %v334 = vpop.f32.mrb[0].mxu0
    %v335 = vadd.f32 0.0, %v334
    %v336 = vpop.f32.mrb[0].mxu0
    %337 = vdwg.mxu0
    %338 = vst [vmem:[#allocation8] sm:$0xff] %v300
    %339 = vst [vmem:[#allocation8 + $0x8] sm:$0xff] %v305
    %340 = vst [vmem:[#allocation8 + $0x10] sm:$0xff] %v310
    %341 = vst [vmem:[#allocation8 + $0x18] sm:$0xff] %v315
    %342 = vst [vmem:[#allocation8 + $0x20] sm:$0xff] %v320
    %343 = vst [vmem:[#allocation8 + $0x28] sm:$0xff] %v325
    %344 = vst [vmem:[#allocation8 + $0x30] sm:$0xff] %v330
    %345 = vst [vmem:[#allocation8 + $0x38] sm:$0xff] %v335
    // Predicated region
    $region26: #{tpu_custom_call.1} parent=1 // pred_check
      _
    $region27: #{tpu_custom_call.1} parent=1 // pred_check_branch
      %347 = sbr.rel (0) target = $region29
    $region28: #{tpu_custom_call.1} parent=1 // pred_region
      %s349 = ssub.s32 1024, 1024
      %350 = vsyncadd [#allocation4], %s349
      %s351 = sshll.u32 [#allocation8], 4
      %s352 = int_to_ptr.vmem [resolvable:$true] %s351
      %357 = dma.vmem_to_hbm [thread:$0]  %s352, 1024, %s3, [#allocation4], 128, 128, 8
    $region29: #{tpu_custom_call.1} parent=1 // pred_fallthru
      _
    // Predicated region
    $region30: #{tpu_custom_call.1} parent=1 // pred_check
      _
    $region31: #{tpu_custom_call.1} parent=1 // pred_check_branch
      %359 = sbr.rel (0) target = $region33
    $region32: #{tpu_custom_call.1} parent=1 // pred_region
      %360 = dma.done [#allocation4], 1024
    $region33: #{tpu_custom_call.1} parent=1 // pred_fallthru
      _
    %361 = vsyncpa [#allocation3], 1
    %362 = vsyncpa [#allocation6], 1
    %363 = vsyncpa [#allocation4], 1

</llo_original>
